<compile_context>
chip_gen: v5e
topology: v5e:2x2
jax: 0.10.0
libtpu: 0.0.40
codegen_flags: <defaults>
</compile_context>

<pallas_src>
import functools
import math

import jax
import jax.numpy as jnp
from jax.experimental import pallas as pl
from jax.experimental.pallas import tpu as pltpu


# ----------------------------------------------------------------------------
# Tiling / compiler-parameter helpers
# ----------------------------------------------------------------------------
def _tile(dim, target, gran):
    """Largest block <= target that divides `dim` and is a multiple of `gran`
    (TPU sublane/lane granularity).  Falls back to the full dimension (always a
    legal block) when no aligned divisor exists or dim <= target."""
    if dim <= target:
        return dim
    t = (target // gran) * gran
    while t >= gran:
        if dim % t == 0:
            return t
        t -= gran
    return dim


@functools.lru_cache(maxsize=None)
def _vmem_limit_bytes():
    """Generation-aware scoped-VMEM limit: ~3/4 of physical, capped at 64 MiB
    (v5e/v6e have 128 MiB physical, v7x only 64 MiB per TensorCore)."""
    try:
        cap = int(pltpu.get_tpu_info().vmem_capacity_bytes)
    except Exception:
        cap = 64 * 1024 * 1024
    return max(32 * 1024 * 1024, min(cap * 3 // 4, 64 * 1024 * 1024))


def _compiler_params(dimension_semantics):
    return pltpu.CompilerParams(
        dimension_semantics=dimension_semantics,
        vmem_limit_bytes=_vmem_limit_bytes(),
    )


# ----------------------------------------------------------------------------
# Kernel 1: fused  out = [cos](A @ B + bias)   (random-feature projection)
# ----------------------------------------------------------------------------
def _matmul_bias_act_kernel(a_ref, b_ref, bias_ref, o_ref, *, apply_cos):
    k = pl.program_id(2)
    prod = jnp.dot(a_ref[...], b_ref[...], preferred_element_type=jnp.float32)

    @pl.when(k == 0)
    def _():
        o_ref[...] = prod

    @pl.when(k > 0)
    def _():
        o_ref[...] += prod

    @pl.when(k == pl.num_programs(2) - 1)
    def _():
        z = o_ref[...] + bias_ref[...]
        o_ref[...] = jnp.cos(z) if apply_cos else z


def matmul_bias_act(a, b, bias, *, apply_cos, block_m=256, block_n=512,
                    block_k=512):
    """out = (cos)(A @ B + bias); A:(M,K), B:(K,N), bias:(N,)."""
    M, K = a.shape
    K2, N = b.shape
    assert K == K2 and bias.shape == (N,)
    tm = _tile(M, block_m, 8)
    tn = _tile(N, block_n, 128)
    tk = _tile(K, block_k, 128)
    kernel = functools.partial(_matmul_bias_act_kernel, apply_cos=apply_cos)
    return pl.pallas_call(
        kernel,
        out_shape=jax.ShapeDtypeStruct((M, N), jnp.float32),
        grid=(M // tm, N // tn, K // tk),
        in_specs=[
            pl.BlockSpec((tm, tk), lambda i, j, k: (i, k)),
            pl.BlockSpec((tk, tn), lambda i, j, k: (k, j)),
            pl.BlockSpec((1, tn), lambda i, j, k: (0, j)),
        ],
        out_specs=pl.BlockSpec((tm, tn), lambda i, j, k: (i, j)),
        compiler_params=_compiler_params(("parallel", "parallel", "arbitrary")),
    )(a, b, bias.reshape(1, N))


_COS_IN_KERNEL = True  # flipped to False if Mosaic cannot lower cos in-kernel


def random_feature_projection(x, weight, bias, **block_kw):
    """cos(x @ weight + bias) with matmul+bias+cos fused in one Pallas kernel."""
    global _COS_IN_KERNEL
    if _COS_IN_KERNEL:
        try:
            return matmul_bias_act(x, weight, bias, apply_cos=True, **block_kw)
        except Exception:
            _COS_IN_KERNEL = False
    # TODO(synk): this Mosaic build can't lower cos inside the kernel; keep the
    # matmul+bias fused and apply cos as a cheap XLA elementwise op instead.
    return jnp.cos(matmul_bias_act(x, weight, bias, apply_cos=False, **block_kw))


# ----------------------------------------------------------------------------
# Kernel 2: fused predictive covariance  S = ridge * X @ C @ X^T  (one call)
# ----------------------------------------------------------------------------
def _xcxt_kernel(xl_ref, c_ref, xr_ref, o_ref, t_ref, *, ridge):
    j = pl.program_id(1)
    k = pl.program_id(2)
    nk = pl.num_programs(2)

    @pl.when(j == 0)
    def _build_t():
        # T_i[:, k-th column chunk] = X_i @ C[:, k-th chunk]  (full-depth MXU dot)
        t_ref[k] = jnp.dot(xl_ref[...], c_ref[...],
                           preferred_element_type=jnp.float32)

    @pl.when(j > 0)
    def _accum_s():
        # S_i,(j-1) += T_i[:, k-th chunk] @ X_(j-1)[:, k-th chunk]^T
        prod = jax.lax.dot_general(
            t_ref[k], xr_ref[...],
            dimension_numbers=(((1,), (1,)), ((), ())),
            preferred_element_type=jnp.float32)

        @pl.when(k == 0)
        def _():
            o_ref[...] = prod

        @pl.when(k > 0)
        def _():
            o_ref[...] += prod

        @pl.when(k == nk - 1)
        def _():
            o_ref[...] = o_ref[...] * jnp.float32(ridge)


def predictive_covariance(gp_feature, covariance_matrix, ridge_penalty, *,
                          block_b=256, block_k=512):
    """S = ridge * X @ C @ X^T in a single pallas_call; the T = X_i @ C panel
    stays resident in a VMEM scratch (never written to HBM)."""
    B, D = gp_feature.shape
    assert covariance_matrix.shape == (D, D)
    tm = _tile(B, block_b, 8)      # S row tile     (sublane granularity)
    tn = _tile(B, block_b, 128)    # S column tile  (lane granularity)
    tk = _tile(D, block_k, 128)
    nb_rows = B // tm
    nb_cols = B // tn
    nk = D // tk
    kernel = functools.partial(_xcxt_kernel, ridge=float(ridge_penalty))

    def xl_map(i, j, k):                       # X row panel, full width
        return (i, 0)

    def c_map(i, j, k):                        # C column chunk; frozen for j>0
        return (0, jnp.where(j == 0, k, nk - 1))

    def xr_map(i, j, k):                       # X_(j-1) column chunk
        return (jnp.maximum(j - 1, 0), jnp.where(j == 0, 0, k))

    def o_map(i, j, k):
        return (i, jnp.maximum(j - 1, 0))

    return pl.pallas_call(
        kernel,
        out_shape=jax.ShapeDtypeStruct((B, B), jnp.float32),
        grid=(nb_rows, nb_cols + 1, nk),       # j == 0 builds T_i, j >= 1 emits S
        in_specs=[
            pl.BlockSpec((tm, D), xl_map),
            pl.BlockSpec((D, tk), c_map),
            pl.BlockSpec((tn, tk), xr_map),
        ],
        out_specs=pl.BlockSpec((tm, tn), o_map),
        scratch_shapes=[pltpu.VMEM((nk, tm, tk), jnp.float32)],   # resident T_i
        compiler_params=_compiler_params(("parallel", "arbitrary", "arbitrary")),
    )(gp_feature, covariance_matrix, gp_feature)


# ----------------------------------------------------------------------------
# Kernel 3: Laplace precision-matrix update (in place over the P buffer)
# ----------------------------------------------------------------------------
def _precision_collapsed_kernel(xi_ref, xj_ref, p_ref, out_ref, *, momentum,
                                batch_size):
    # Full-batch contraction in one MXU dot; momentum blend fused in the same step.
    xtx = jax.lax.dot_general(
        xi_ref[...], xj_ref[...],
        dimension_numbers=(((0,), (0,)), ((), ())),
        preferred_element_type=jnp.float32)
    if momentum > 0:
        out_ref[...] = (jnp.float32(momentum) * p_ref[...]
                        + jnp.float32((1.0 - momentum) / batch_size) * xtx)
    else:
        out_ref[...] = p_ref[...] + xtx


def _precision_3d_kernel(xi_ref, xj_ref, p_ref, out_ref, *, momentum,
                         batch_size):
    k = pl.program_id(2)
    partial = jax.lax.dot_general(
        xi_ref[...], xj_ref[...],
        dimension_numbers=(((0,), (0,)), ((), ())),
        preferred_element_type=jnp.float32)

    @pl.when(k == 0)
    def _():
        out_ref[...] = partial

    @pl.when(k > 0)
    def _():
        out_ref[...] += partial

    @pl.when(k == pl.num_programs(2) - 1)
    def _():
        if momentum > 0:
            out_ref[...] = (jnp.float32(momentum) * p_ref[...]
                            + jnp.float32((1.0 - momentum) / batch_size)
                            * out_ref[...])
        else:
            out_ref[...] = p_ref[...] + out_ref[...]


def update_precision_matrix(gp_feature, precision_matrix, momentum, *,
                            block_d=512, block_b=1024, force_3d=False):
    """P_new = m*P + (1-m)/B * X^T X  (or P + X^T X if m == 0), written in place
    over the old precision buffer via input_output_aliases."""
    B, D = gp_feature.shape
    assert precision_matrix.shape == (D, D)
    momentum = float(momentum)
    td = _tile(D, block_d, 128)
    budget = int(_vmem_limit_bytes() * 0.7)
    # collapsed-path footprint: 2 X operands (B, td) + P/out tiles, double-buffered
    collapsed_bytes = 2 * 2 * B * td * 4 + 2 * 2 * td * td * 4

    if (not force_3d) and collapsed_bytes <= budget:
        kernel = functools.partial(_precision_collapsed_kernel,
                                   momentum=momentum, batch_size=B)
        return pl.pallas_call(
            kernel,
            out_shape=jax.ShapeDtypeStruct((D, D), jnp.float32),
            grid=(D // td, D // td),
            in_specs=[
                pl.BlockSpec((B, td), lambda i, j: (0, i)),
                pl.BlockSpec((B, td), lambda i, j: (0, j)),
                pl.BlockSpec((td, td), lambda i, j: (i, j)),
            ],
            out_specs=pl.BlockSpec((td, td), lambda i, j: (i, j)),
            input_output_aliases={2: 0},
            compiler_params=_compiler_params(("parallel", "parallel")),
        )(gp_feature, gp_feature, precision_matrix)

    # Fallback for very large batches: keep a batch-reduction axis with a large
    # batch tile so the per-step output RMW traffic stays small (v5e store slot).
    tb = _tile(B, block_b, 8)
    kernel = functools.partial(_precision_3d_kernel,
                               momentum=momentum, batch_size=B)
    return pl.pallas_call(
        kernel,
        out_shape=jax.ShapeDtypeStruct((D, D), jnp.float32),
        grid=(D // td, D // td, B // tb),
        in_specs=[
            pl.BlockSpec((tb, td), lambda i, j, k: (k, i)),
            pl.BlockSpec((tb, td), lambda i, j, k: (k, j)),
            pl.BlockSpec((td, td), lambda i, j, k: (i, j)),
        ],
        out_specs=pl.BlockSpec((td, td), lambda i, j, k: (i, j)),
        input_output_aliases={2: 0},
        compiler_params=_compiler_params(("parallel", "parallel", "arbitrary")),
    )(gp_feature, gp_feature, precision_matrix)


# ----------------------------------------------------------------------------
# Module-equivalent state + forward
# ----------------------------------------------------------------------------
class LaplaceRandomFeatureCovariance:
    def __init__(self, gp_feature_dim, momentum=0.999, ridge_penalty=1e-6,
                 key=None):
        self.ridge_penalty = ridge_penalty
        self.momentum = momentum
        self.gp_feature_dim = gp_feature_dim
        self.precision_matrix = jnp.zeros((gp_feature_dim, gp_feature_dim),
                                          jnp.float32)
        if key is None:
            key = jax.random.PRNGKey(42)
        bound = math.sqrt(6.0 / (gp_feature_dim + gp_feature_dim))
        self.covariance_matrix = jax.random.uniform(
            key, (gp_feature_dim, gp_feature_dim), jnp.float32,
            minval=-bound, maxval=bound)
        self.if_update_covariance = False
        self.training = True

    def reset_precision_matrix(self):
        self.precision_matrix = jnp.zeros_like(self.precision_matrix)

    def update_feature_covariance_matrix(self):
        if self.if_update_covariance:
            # TODO(synk): dense matrix inverse has no clean Pallas equivalent; plain JAX.
            eye = jnp.eye(self.gp_feature_dim, dtype=jnp.float32)
            return jnp.linalg.inv(self.ridge_penalty * eye + self.precision_matrix)
        return self.covariance_matrix

    def forward(self, inputs):
        batch_size = inputs.shape[0]
        if self.training:
            self.precision_matrix = update_precision_matrix(
                inputs, self.precision_matrix, self.momentum)
            self.if_update_covariance = True
            return jnp.eye(batch_size, dtype=jnp.float32)
        self.covariance_matrix = self.update_feature_covariance_matrix()
        self.if_update_covariance = False
        return predictive_covariance(inputs, self.covariance_matrix,
                                     self.ridge_penalty)


class RandomFeatureGaussianProcess:
    """JAX/Pallas port of the torch RandomFeatureGaussianProcess forward."""

    def __init__(self, input_dim, units, num_inducing=1024, gp_kernel_scale=1.0,
                 gp_output_bias=0.0, normalize_input=True, key=None):
        if key is None:
            key = jax.random.PRNGKey(42)
        k_w, k_b, k_out, k_cov = jax.random.split(key, 4)
        self.units = units
        self.num_inducing = num_inducing
        self.normalize_input = normalize_input
        self.gp_input_scale = (1.0 / gp_kernel_scale ** 0.5
                               if gp_kernel_scale is not None else None)
        self.gp_cov_momentum = 0.999
        self.gp_cov_ridge_penalty = 1e-6
        # LayerNorm (torch defaults: weight=1, bias=0, eps=1e-5).
        self.ln_weight = jnp.ones((input_dim,), jnp.float32)
        self.ln_bias = jnp.zeros((input_dim,), jnp.float32)
        self.ln_eps = 1e-5
        # Frozen random-feature projection, stored pre-transposed (in, out) so
        # the MXU consumes it without a transpose.
        self.rf_weight = jax.random.normal(k_w, (input_dim, num_inducing),
                                           jnp.float32)
        self.rf_bias = jax.random.uniform(k_b, (num_inducing,), jnp.float32,
                                          minval=0.0, maxval=2.0 * math.pi)
        # GP output layer (bias-free) + fixed output bias vector.
        self.out_weight = (jax.random.normal(k_out, (num_inducing, units),
                                             jnp.float32)
                           / math.sqrt(num_inducing))
        self.gp_output_bias = jnp.full((units,), gp_output_bias, jnp.float32)
        self._gp_cov_layer = LaplaceRandomFeatureCovariance(
            num_inducing, momentum=self.gp_cov_momentum,
            ridge_penalty=self.gp_cov_ridge_penalty, key=k_cov)
        self.training = True

    def reset_covariance_matrix(self):
        self._gp_cov_layer.reset_precision_matrix()

    def _layer_norm(self, x):
        mean = jnp.mean(x, axis=-1, keepdims=True)
        var = jnp.var(x, axis=-1, keepdims=True)
        xn = (x - mean) * jax.lax.rsqrt(var + self.ln_eps)
        return xn * self.ln_weight + self.ln_bias

    def random_features(self, gp_inputs):
        # Fused matmul + bias + cos Pallas kernel (no HBM round trip for the
        # pre-activation).
        return random_feature_projection(gp_inputs, self.rf_weight, self.rf_bias)

    @staticmethod
    def mean_field_logits(logits, covmat, mean_field_factor):
        variances = jnp.diagonal(covmat)
        logits_scale = jnp.sqrt(1.0 + variances * mean_field_factor)
        return logits / logits_scale[:, None]

    def forward(self, inputs):
        gp_inputs = inputs
        if self.normalize_input:
            gp_inputs = self._layer_norm(gp_inputs)
        elif self.gp_input_scale is not None:
            gp_inputs = gp_inputs * self.gp_input_scale
        gp_feature = self.random_features(gp_inputs)
        # Output head is (num_inducing -> units=16): far too narrow for
        # lane-dense MXU tiles, so it is left to XLA (fused dot + bias).
        gp_output = (jnp.dot(gp_feature, self.out_weight,
                             precision=jax.lax.Precision.HIGHEST)
                     + self.gp_output_bias)
        if self.training:
            return gp_output
        self._gp_cov_layer.training = False
        gp_covmat = self._gp_cov_layer.forward(gp_feature)
        return self.mean_field_logits(gp_output, gp_covmat, mean_field_factor=1.0)


# ----------------------------------------------------------------------------
# Demo / correctness checks
# ----------------------------------------------------------------------------
if __name__ == "__main__":
    key = jax.random.PRNGKey(0)
    k_feat, k_cov, k_x, k_mod, k_w = jax.random.split(key, 5)

    batch_size = 16
    gp_feature_dim = 512      # num_inducing; multiple of 128 -> lane-dense tiles
    input_dim = 256
    units = 16
    hp = jax.lax.Precision.HIGHEST  # exact-f32 references

    # --- kernel unit checks on multi-tile grids -------------------------------
    gp_feature = jax.random.normal(k_feat, (batch_size, gp_feature_dim),
                                   jnp.float32)

    # fused matmul + bias (+ cos), grid (2, 2, 2)
    a = jax.random.normal(k_x, (batch_size, input_dim), jnp.float32)
    w = 0.1 * jax.random.normal(k_w, (input_dim, gp_feature_dim), jnp.float32)
    bias = jnp.linspace(0.0, 2.0 * math.pi, gp_feature_dim, dtype=jnp.float32)
    z_ref = jnp.matmul(a, w, precision=hp) + bias
    z_k = matmul_bias_act(a, w, bias, apply_cos=False,
                          block_m=8, block_n=256, block_k=128)
    jax.block_until_ready(z_k)
    assert jnp.allclose(z_k, z_ref, atol=1e-4, rtol=1e-4)
    phi_k = random_feature_projection(a, w, bias,
                                      block_m=8, block_n=256, block_k=128)
    jax.block_until_ready(phi_k)
    assert jnp.allclose(phi_k, jnp.cos(z_ref), atol=1e-3, rtol=1e-3)

    # fused predictive covariance  S = ridge * X @ C @ X^T  (grid 2 x 2 x 4)
    c_mat = (jax.random.normal(k_cov, (gp_feature_dim, gp_feature_dim),
                               jnp.float32) / gp_feature_dim)
    ridge = 1e-2
    s_k = predictive_covariance(gp_feature, c_mat, ridge, block_b=8, block_k=128)
    jax.block_until_ready(s_k)
    s_ref = ridge * jnp.matmul(jnp.matmul(gp_feature, c_mat, precision=hp),
                               gp_feature.T, precision=hp)
    assert jnp.allclose(s_k, s_ref, atol=1e-4, rtol=1e-4)

    # precision update: collapsed batch-reduction path and forced 3-D fallback
    xtx = jnp.matmul(gp_feature.T, gp_feature, precision=hp)
    p_col = update_precision_matrix(
        gp_feature, jnp.zeros((gp_feature_dim, gp_feature_dim), jnp.float32),
        0.999, block_d=256)
    jax.block_until_ready(p_col)
    assert jnp.allclose(p_col, (1.0 - 0.999) * xtx / batch_size,
                        atol=1e-6, rtol=1e-5)
    p_3d = update_precision_matrix(
        gp_feature, jnp.zeros((gp_feature_dim, gp_feature_dim), jnp.float32),
        0.0, block_d=256, block_b=8, force_3d=True)
    jax.block_until_ready(p_3d)
    assert jnp.allclose(p_3d, xtx, atol=1e-4, rtol=1e-5)

    # --- LaplaceRandomFeatureCovariance train + eval ---------------------------
    cov_layer = LaplaceRandomFeatureCovariance(gp_feature_dim, momentum=0.999,
                                               ridge_penalty=1e-6, key=k_cov)
    cov_layer.training = True
    out_train = cov_layer.forward(gp_feature)
    jax.block_until_ready(cov_layer.precision_matrix)
    assert jnp.allclose(cov_layer.precision_matrix,
                        (1.0 - 0.999) * xtx / batch_size, atol=1e-6, rtol=1e-5)
    assert jnp.allclose(out_train, jnp.eye(batch_size), atol=0.0)

    cov_layer.training = False
    out_eval = cov_layer.forward(gp_feature)
    jax.block_until_ready(out_eval)
    c_used = cov_layer.covariance_matrix    # refreshed inverse actually used
    gp_cov_ref = (jnp.matmul(jnp.matmul(gp_feature, c_used, precision=hp),
                             gp_feature.T, precision=hp) * cov_layer.ridge_penalty)
    assert out_eval.shape == (batch_size, batch_size)
    assert jnp.allclose(out_eval, gp_cov_ref, atol=2e-3, rtol=2e-3)

    # --- full RandomFeatureGaussianProcess forward -----------------------------
    x = jax.random.normal(k_x, (batch_size, input_dim), jnp.float32)
    rfgp = RandomFeatureGaussianProcess(input_dim, units,
                                        num_inducing=gp_feature_dim, key=k_mod)
    rfgp.training = True
    logits_train = rfgp.forward(x)
    jax.block_until_ready(logits_train)
    assert logits_train.shape == (batch_size, units)

    rfgp.training = False
    logits_eval = rfgp.forward(x)
    jax.block_until_ready(logits_eval)

    # pure-JAX reference of the eval forward
    xn = rfgp._layer_norm(x)
    phi_ref = jnp.cos(jnp.matmul(xn, rfgp.rf_weight, precision=hp) + rfgp.rf_bias)
    out_ref = jnp.matmul(phi_ref, rfgp.out_weight, precision=hp) + rfgp.gp_output_bias
    c0 = rfgp._gp_cov_layer.covariance_matrix
    cov_ref2 = (jnp.matmul(jnp.matmul(phi_ref, c0, precision=hp), phi_ref.T,
                           precision=hp) * rfgp.gp_cov_ridge_penalty)
    logits_ref = out_ref / jnp.sqrt(1.0 + jnp.diagonal(cov_ref2))[:, None]
    assert logits_eval.shape == (batch_size, units)
    assert jnp.allclose(logits_eval, logits_ref, atol=1e-3, rtol=1e-3)

    print("KERNEL_OK")
</pallas_src>

<mosaic_0001>
module attributes {stable_mosaic.version = 11 : i64} {
  func.func @_matmul_bias_act_kernel(%arg0: i32, %arg1: i32, %arg2: i32, %arg3: memref<8x128xf32, #tpu.memory_space<vmem>>, %arg4: memref<128x256xf32, #tpu.memory_space<vmem>>, %arg5: memref<1x256xf32, #tpu.memory_space<vmem>>, %arg6: memref<8x256xf32, #tpu.memory_space<vmem>>) attributes {dimension_semantics = [#tpu.dimension_semantics<parallel>, #tpu.dimension_semantics<parallel>, #tpu.dimension_semantics<arbitrary>], iteration_bounds = array<i64: 2, 2, 2>, scalar_prefetch = 0 : i64, scratch_operands = 0 : i64, tpu.core_type = #tpu.core_type<tc>, window_params = [{transform_indices = @transform_0, window_bounds = array<i64: 8, 128>}, {transform_indices = @transform_1, window_bounds = array<i64: 128, 256>}, {transform_indices = @transform_2, window_bounds = array<i64: 1, 256>}, {transform_indices = @transform_3, window_bounds = array<i64: 8, 256>}]} {
    %c0 = arith.constant 0 : index
    %c0_0 = arith.constant 0 : index
    %0 = vector.load %arg3[%c0, %c0_0] : memref<8x128xf32, #tpu.memory_space<vmem>>, vector<8x128xf32>
    %c0_1 = arith.constant 0 : index
    %c0_2 = arith.constant 0 : index
    %1 = vector.load %arg4[%c0_1, %c0_2] : memref<128x256xf32, #tpu.memory_space<vmem>>, vector<128x256xf32>
    %cst = arith.constant dense<0.000000e+00> : vector<8x256xf32>
    %2 = tpu.matmul %0, %1, %cst {dimension_numbers = #tpu.dot_dimension_numbers<[1], [0], [0], [1], [0, 0, 1, 1], [], []>} : vector<8x128xf32>, vector<128x256xf32>, vector<8x256xf32> -> vector<8x256xf32>
    %c0_i32 = arith.constant 0 : i32
    %3 = arith.cmpi eq, %arg2, %c0_i32 : i32
    %4 = arith.extui %3 : i1 to i32
    %c0_i32_3 = arith.constant 0 : i32
    %5 = arith.cmpi ne, %4, %c0_i32_3 : i32
    scf.if %5 {
      %c0_7 = arith.constant 0 : index
      %c0_8 = arith.constant 0 : index
      %12 = vector.load %arg6[%c0_7, %c0_8] : memref<8x256xf32, #tpu.memory_space<vmem>>, vector<8x256xf32>
      tpu.vector_store %arg6[%c0_7, %c0_8], %2 {strides = array<i32>} : memref<8x256xf32, #tpu.memory_space<vmem>>, vector<8x256xf32>,
    } else {
    }
    %c0_i32_4 = arith.constant 0 : i32
    %6 = arith.cmpi sgt, %arg2, %c0_i32_4 : i32
    %7 = arith.extui %6 : i1 to i32
    %c0_i32_5 = arith.constant 0 : i32
    %8 = arith.cmpi ne, %7, %c0_i32_5 : i32
    scf.if %8 {
      %c0_7 = arith.constant 0 : index
      %c0_8 = arith.constant 0 : index
      %12 = vector.load %arg6[%c0_7, %c0_8] : memref<8x256xf32, #tpu.memory_space<vmem>>, vector<8x256xf32>
      %13 = arith.addf %12, %2 : vector<8x256xf32>
      %c0_9 = arith.constant 0 : index
      %c0_10 = arith.constant 0 : index
      %14 = vector.load %arg6[%c0_9, %c0_10] : memref<8x256xf32, #tpu.memory_space<vmem>>, vector<8x256xf32>
      tpu.vector_store %arg6[%c0_9, %c0_10], %13 {strides = array<i32>} : memref<8x256xf32, #tpu.memory_space<vmem>>, vector<8x256xf32>,
    } else {
    }
    %c1_i32 = arith.constant 1 : i32
    %9 = arith.cmpi eq, %arg2, %c1_i32 : i32
    %10 = arith.extui %9 : i1 to i32
    %c0_i32_6 = arith.constant 0 : i32
    %11 = arith.cmpi ne, %10, %c0_i32_6 : i32
    scf.if %11 {
      %c0_7 = arith.constant 0 : index
      %c0_8 = arith.constant 0 : index
      %12 = vector.load %arg6[%c0_7, %c0_8] : memref<8x256xf32, #tpu.memory_space<vmem>>, vector<8x256xf32>
      %c0_9 = arith.constant 0 : index
      %c0_10 = arith.constant 0 : index
      %13 = vector.load %arg5[%c0_9, %c0_10] : memref<1x256xf32, #tpu.memory_space<vmem>>, vector<1x256xf32>
      %14 = vector.broadcast %13 : vector<1x256xf32> to vector<8x256xf32>
      %15 = arith.addf %12, %14 : vector<8x256xf32>
      %c0_11 = arith.constant 0 : index
      %c0_12 = arith.constant 0 : index
      %16 = vector.load %arg6[%c0_11, %c0_12] : memref<8x256xf32, #tpu.memory_space<vmem>>, vector<8x256xf32>
      tpu.vector_store %arg6[%c0_11, %c0_12], %15 {strides = array<i32>} : memref<8x256xf32, #tpu.memory_space<vmem>>, vector<8x256xf32>,
    } else {
    }
    return
  }
  func.func @transform_0(%arg0: i32, %arg1: i32, %arg2: i32) -> (i32, i32) {
    %c0_i32 = arith.constant 0 : i32
    return %arg0, %arg2 : i32, i32
  }
  func.func @transform_1(%arg0: i32, %arg1: i32, %arg2: i32) -> (i32, i32) {
    %c0_i32 = arith.constant 0 : i32
    return %arg2, %arg1 : i32, i32
  }
  func.func @transform_2(%arg0: i32, %arg1: i32, %arg2: i32) -> (i32, i32) {
    %c0_i32 = arith.constant 0 : i32
    %c0_i32_0 = arith.constant 0 : i32
    return %c0_i32, %arg1 : i32, i32
  }
  func.func @transform_3(%arg0: i32, %arg1: i32, %arg2: i32) -> (i32, i32) {
    %c0_i32 = arith.constant 0 : i32
    return %arg0, %arg1 : i32, i32
  }
}

</mosaic_0001>

<llo_original>
// kernel: tpu_custom_call.1
$region0: #{tpu_custom_call.1}
  #allocation0 [shape = 'u32[]', space=smem, size = 0x4, offset = 0x4, fixed_abs, tag = 'smem constant byte address 0x4 - core index']
  #allocation1 [shape = 'u32[72,128]{1,0:T(1,128)}', space=vmem, size = 0x9000, scoped, tag = 'internal scratch']
  %s0 = inlined_call_operand.hbm [shape: f32[16,256], index: 0, kind: input, shape index: {}]
  %s1 = inlined_call_operand.hbm [shape: f32[256,512], index: 1, kind: input, shape index: {}]
  %s2 = inlined_call_operand.hbm [shape: f32[1,512], index: 2, kind: input, shape index: {}]
  %s3 = inlined_call_operand.hbm [shape: f32[16,512], index: 3, kind: output, shape index: {}]
  %s4 = sld [smem:[#allocation0]]
  $region69: #{tpu_custom_call.1} parent=0
    _
  %s6 = ssub.s32 1, %s4
  %s7 = scalar_select 0, %s6, %s4
  $region1: #{tpu_custom_call.1} parent=0
    #allocation2 [shape = 'u8[8192]{0}', space=vmem, size = 0x2000, scoped, tag = 'input window, operand 0']
    #allocation3 [shape = 's32[2]{0}', space=sflag, size = 0x8, scoped, tag = 'scoped memory for tpu_custom_call.1']
    #allocation4 [shape = 's32[2]{0}', space=sflag, size = 0x8, scoped, tag = 'scoped memory for tpu_custom_call.1']
    #allocation5 [shape = 'u8[262144]{0}', space=vmem, size = 0x40000, scoped, tag = 'input window, operand 1']
    #allocation6 [shape = 's32[2]{0}', space=sflag, size = 0x8, scoped, tag = 'scoped memory for tpu_custom_call.1']
    #allocation7 [shape = 'u8[2048]{0}', space=vmem, size = 0x800, scoped, tag = 'input window, operand 2']
    #allocation8 [shape = 'u8[16384]{0}', space=vmem, size = 0x4000, scoped, tag = 'output window, operand 0']
    %8 = vsyncpa [#allocation3], 0
    %s9 = scalar_lea.sflag [#allocation3], 1
    %10 = vsyncpa %s9, 0
    %11 = vsyncpa [#allocation6], 0
    %s12 = scalar_lea.sflag [#allocation6], 1
    %13 = vsyncpa %s12, 0
    %14 = vsyncpa [#allocation4], 0
    %s15 = scalar_lea.sflag [#allocation4], 1
    %16 = vsyncpa %s15, 0
    loop: start=0, step=1, limit=10
    $region2: #{tpu_custom_call.1} parent=1 // loop_pre_header
      _
    $region3: #{tpu_custom_call.1} parent=1 // loop_header
      %s18 = sphi 0, %s22
      %p19 = scmp.ge.s32.totalorder %s18, 10
      %s25 = sphi 0, %s44
      %s26 = sphi 0, %s40
      %s27 = sphi 0, %s36
      %s28 = sphi 0, %s25
      %s29 = sphi 0, %s26
      %s30 = sphi 0, %s27
      %s31 = sphi 0, %s28
      %s32 = sphi 0, %s29
      %s33 = sphi 0, %s30
      %s49 = sphi 0, %s51
      %s52 = sphi 0, %s49
      %s53 = sphi 0, %s52
      %s69 = sphi 0, %s53
      %s77 = sphi 0, %s79
      %s80 = sphi 0, %s77
      %s81 = sphi 0, %s80
      %s97 = sphi 0, %s81
      %s103 = sphi 0, %s105
      %s106 = sphi 0, %s103
      %s107 = sphi 0, %s106
      %s123 = sphi 0, %s107
      %s131 = sphi 0, %s133
      %s134 = sphi 0, %s131
      %s135 = sphi 0, %s134
      %s151 = sphi 0, %s135
    $region4: #{tpu_custom_call.1} parent=1 // loop_header_branch
      %21 = sbr.rel (%p19) target = $region8
    $region5: #{tpu_custom_call.1} parent=1 // loop_body
      %s23 = ssub.s32 %s18, 1
      %s24 = ssub.s32 %s18, 2
      %s34 = sadd.s32 1, %s27
      %p35 = scmp.ge.s32.totalorder %s34, 2
      %s36 = scalar_select %p35, 0, %s34
      %s37 = sadd.s32 1, %s26
      %s38 = scalar_select %p35, %s37, %s26
      %p39 = scmp.ge.s32.totalorder %s38, 2
      %s40 = scalar_select %p39, 0, %s38
      %s41 = sadd.s32 1, %s25
      %s42 = scalar_select %p39, %s41, %s25
      %p43 = scmp.ge.s32.totalorder %s42, 2
      %s44 = scalar_select %p43, 0, %s42
      %s45 = ssub.s32 %s25, %s44
      %s46 = ssub.s32 %s27, %s36
      %s47 = sor.u32 %s45, %s46
      %p48 = scmp.eq.s32.totalorder %s47, 0
      %s50 = sadd.s32 %s49, 1
      %s51 = scalar_select %p48, %s49, %s50
      %p54 = pneg %p48
      %p55 = scmp.eq.s32.totalorder %s18, 7
      %p56 = por %p54, %p55
      %p57 = scmp.ne.s32.totalorder %s49, %s52
      %p58 = scmp.eq.s32.totalorder %s18, 0
      %p59 = por %p57, %p58
      %p60 = scmp.ne.s32.totalorder %s49, %s52
      %p61 = scmp.eq.s32.totalorder %s23, 7
      %p62 = por %p60, %p61
      %p63 = scmp.ne.s32.totalorder %s52, %s53
      %p64 = scmp.eq.s32.totalorder %s23, 0
      %p65 = por %p63, %p64
      %p66 = scmp.ne.s32.totalorder %s52, %s53
      %p67 = scmp.eq.s32.totalorder %s24, 7
      %p68 = por %p66, %p67
      %p70 = scmp.ne.s32.totalorder %s53, %s69
      %p71 = scmp.eq.s32.totalorder %s24, 0
      %p72 = por %p70, %p71
      %s73 = ssub.s32 %s27, %s36
      %s74 = ssub.s32 %s26, %s40
      %s75 = sor.u32 %s73, %s74
      %p76 = scmp.eq.s32.totalorder %s75, 0
      %s78 = sadd.s32 %s77, 1
      %s79 = scalar_select %p76, %s77, %s78
      %p82 = pneg %p76
      %p83 = scmp.eq.s32.totalorder %s18, 7
      %p84 = por %p82, %p83
      %p85 = scmp.ne.s32.totalorder %s77, %s80
      %p86 = scmp.eq.s32.totalorder %s18, 0
      %p87 = por %p85, %p86
      %p88 = scmp.ne.s32.totalorder %s77, %s80
      %p89 = scmp.eq.s32.totalorder %s23, 7
      %p90 = por %p88, %p89
      %p91 = scmp.ne.s32.totalorder %s80, %s81
      %p92 = scmp.eq.s32.totalorder %s23, 0
      %p93 = por %p91, %p92
      %p94 = scmp.ne.s32.totalorder %s80, %s81
      %p95 = scmp.eq.s32.totalorder %s24, 7
      %p96 = por %p94, %p95
      %p98 = scmp.ne.s32.totalorder %s81, %s97
      %p99 = scmp.eq.s32.totalorder %s24, 0
      %p100 = por %p98, %p99
      %s101 = ssub.s32 %s26, %s40
      %p102 = scmp.eq.s32.totalorder %s101, 0
      %s104 = sadd.s32 %s103, 1
      %s105 = scalar_select %p102, %s103, %s104
      %p108 = pneg %p102
      %p109 = scmp.eq.s32.totalorder %s18, 7
      %p110 = por %p108, %p109
      %p111 = scmp.ne.s32.totalorder %s103, %s106
      %p112 = scmp.eq.s32.totalorder %s18, 0
      %p113 = por %p111, %p112
      %p114 = scmp.ne.s32.totalorder %s103, %s106
      %p115 = scmp.eq.s32.totalorder %s23, 7
      %p116 = por %p114, %p115
      %p117 = scmp.ne.s32.totalorder %s106, %s107
      %p118 = scmp.eq.s32.totalorder %s23, 0
      %p119 = por %p117, %p118
      %p120 = scmp.ne.s32.totalorder %s106, %s107
      %p121 = scmp.eq.s32.totalorder %s24, 7
      %p122 = por %p120, %p121
      %p124 = scmp.ne.s32.totalorder %s107, %s123
      %p125 = scmp.eq.s32.totalorder %s24, 0
      %p126 = por %p124, %p125
      %s127 = ssub.s32 %s25, %s44
      %s128 = ssub.s32 %s26, %s40
      %s129 = sor.u32 %s127, %s128
      %p130 = scmp.eq.s32.totalorder %s129, 0
      %s132 = sadd.s32 %s131, 1
      %s133 = scalar_select %p130, %s131, %s132
      %p136 = pneg %p130
      %p137 = scmp.eq.s32.totalorder %s18, 7
      %p138 = por %p136, %p137
      %p139 = scmp.ne.s32.totalorder %s131, %s134
      %p140 = scmp.eq.s32.totalorder %s18, 0
      %p141 = por %p139, %p140
      %p142 = scmp.ne.s32.totalorder %s131, %s134
      %p143 = scmp.eq.s32.totalorder %s23, 7
      %p144 = por %p142, %p143
      %p145 = scmp.ne.s32.totalorder %s134, %s135
      %p146 = scmp.eq.s32.totalorder %s23, 0
      %p147 = por %p145, %p146
      %p148 = scmp.ne.s32.totalorder %s134, %s135
      %p149 = scmp.eq.s32.totalorder %s24, 7
      %p150 = por %p148, %p149
      %p152 = scmp.ne.s32.totalorder %s135, %s151
      %p153 = scmp.eq.s32.totalorder %s24, 0
      %p154 = por %p152, %p153
      %p155 = scmp.le.s32.totalorder 1, %s18
      %p156 = scmp.lt.s32.totalorder %s18, 9
      %p157 = pnand %p155, %p156
      %p158 = pneg %p157
      // Predicated region
      $region9: #{tpu_custom_call.1} parent=5 // pred_check
        _
      $region10: #{tpu_custom_call.1} parent=5 // pred_check_branch
        %160 = sbr.rel (%p157) target = $region12
      $region11: #{tpu_custom_call.1} parent=5 // pred_region
        %s161 = ssub.s32 %s18, 1
      $region12: #{tpu_custom_call.1} parent=5 // pred_fallthru
        _
      %p162 = scmp.lt.s32.totalorder %s18, 8
      // Predicated region
      $region13: #{tpu_custom_call.1} parent=5 // pred_check
        %p163 = pneg %p162
      $region14: #{tpu_custom_call.1} parent=5 // pred_check_branch
        %165 = sbr.rel (%p163) target = $region16
      $region15: #{tpu_custom_call.1} parent=5 // pred_region
        // Predicated region
        $region17: #{tpu_custom_call.1} parent=15 // pred_check
          %p166 = pneg %p59
        $region18: #{tpu_custom_call.1} parent=15 // pred_check_branch
          %168 = sbr.rel (%p166) target = $region20
        $region19: #{tpu_custom_call.1} parent=15 // pred_region
          %s169 = sand.u32 %s49, 1
          %s170 = scalar_lea.sflag [#allocation3], %s169
          %s171 = sand.u32 %s49, 1
          %s172 = smul.addr %s171, 8
          %s173 = scalar_lea.vmem [#allocation2], %s172
          %175 = vsyncadd %s170, 0
          %s176 = smul.addr %s25, 2
          %s177 = sadd.s32 %s27, %s176
          %s178 = smul.addr %s177, 8
          %s179 = scalar_lea.hbm %s0, %s178
          %s181 = sshll.u32 %s179, 4
          %s182 = int_to_ptr.hbm [resolvable:$true] %s181
          %s183 = sshll.u32 %s173, 4
          %s184 = int_to_ptr.vmem [resolvable:$true] %s183
          %186 = dma.hbm_to_vmem [thread:$0]  %s182, 128, %s184, %s170
        $region20: #{tpu_custom_call.1} parent=15 // pred_fallthru
          _
        // Predicated region
        $region21: #{tpu_custom_call.1} parent=15 // pred_check
          %p187 = pneg %p87
        $region22: #{tpu_custom_call.1} parent=15 // pred_check_branch
          %189 = sbr.rel (%p187) target = $region24
        $region23: #{tpu_custom_call.1} parent=15 // pred_region
          %s190 = sand.u32 %s18, 1
          %s191 = scalar_lea.sflag [#allocation6], %s190
          %s192 = sand.u32 %s77, 1
          %s193 = smul.addr %s192, 256
          %s194 = scalar_lea.vmem [#allocation5], %s193
          %s195 = smul.u32 16, %s27
          %s196 = smul.u32 2, %s26
          %198 = vsyncadd %s191, 0
          %s199 = smul.addr %s195, 4
          %s200 = sadd.s32 %s196, %s199
          %s201 = smul.addr %s200, 8
          %s202 = scalar_lea.hbm %s1, %s201
          %s203 = sshll.u32 %s202, 4
          %s204 = int_to_ptr.hbm [resolvable:$true] %s203
          %s205 = sshll.u32 %s194, 4
          %s206 = int_to_ptr.vmem [resolvable:$true] %s205
          %211 = dma.hbm_to_vmem [thread:$0]  %s204, 4096, %s206, %s191, 512, 256, 16
        $region24: #{tpu_custom_call.1} parent=15 // pred_fallthru
          _
        // Predicated region
        $region25: #{tpu_custom_call.1} parent=15 // pred_check
          %p212 = pneg %p113
        $region26: #{tpu_custom_call.1} parent=15 // pred_check_branch
          %214 = sbr.rel (%p212) target = $region28
        $region27: #{tpu_custom_call.1} parent=15 // pred_region
          %s215 = sand.u32 %s18, 1
          %s216 = scalar_lea.sflag [#allocation6], %s215
          %s217 = sand.u32 %s103, 1
          %s218 = smul.addr %s217, 2
          %s219 = scalar_lea.vmem [#allocation7], %s218
          %s220 = smul.u32 2, %s26
          %222 = vsyncadd %s216, 0
          %s223 = scalar_lea.hbm %s2, %s220
          %s225 = sshll.u32 %s223, 4
          %s226 = int_to_ptr.hbm [resolvable:$true] %s225
          %s227 = sshll.u32 %s219, 4
          %s228 = int_to_ptr.vmem [resolvable:$true] %s227
          %230 = dma.hbm_to_vmem [thread:$0]  %s226, 32, %s228, %s216
        $region28: #{tpu_custom_call.1} parent=15 // pred_fallthru
          _
      $region16: #{tpu_custom_call.1} parent=5 // pred_fallthru
        _
      %p231 = scmp.le.s32.totalorder 1, %s18
      %p232 = scmp.lt.s32.totalorder %s18, 9
      %p233 = pnand %p231, %p232
      %p234 = pneg %p233
      // Predicated region
      $region29: #{tpu_custom_call.1} parent=5 // pred_check
        _
      $region30: #{tpu_custom_call.1} parent=5 // pred_check_branch
        %236 = sbr.rel (%p233) target = $region32
      $region31: #{tpu_custom_call.1} parent=5 // pred_region
        %s237 = ssub.s32 %s18, 1
        %s238 = sand.u32 %s52, 1
        %s239 = scalar_lea.sflag [#allocation3], %s238
        %s240 = sand.u32 %s52, 1
        %s241 = smul.addr %s240, 8
        %s242 = scalar_lea.vmem [#allocation2], %s241
        // Predicated region
        $region33: #{tpu_custom_call.1} parent=31 // pred_check
          %p243 = pneg %p65
        $region34: #{tpu_custom_call.1} parent=31 // pred_check_branch
          %245 = sbr.rel (%p243) target = $region36
        $region35: #{tpu_custom_call.1} parent=31 // pred_region
          %247 = dma.done %s239, 128
        $region36: #{tpu_custom_call.1} parent=31 // pred_fallthru
          _
        %s248 = sand.u32 %s23, 1
        %s249 = scalar_lea.sflag [#allocation6], %s248
        %s250 = sand.u32 %s80, 1
        %s251 = smul.addr %s250, 256
        %s252 = scalar_lea.vmem [#allocation5], %s251
        // Predicated region
        $region37: #{tpu_custom_call.1} parent=31 // pred_check
          %p253 = pneg %p93
        $region38: #{tpu_custom_call.1} parent=31 // pred_check_branch
          %255 = sbr.rel (%p253) target = $region40
        $region39: #{tpu_custom_call.1} parent=31 // pred_region
          %257 = dma.done %s249, 4096
        $region40: #{tpu_custom_call.1} parent=31 // pred_fallthru
          _
        %s258 = sand.u32 %s23, 1
        %s259 = scalar_lea.sflag [#allocation6], %s258
        %s260 = sand.u32 %s106, 1
        %s261 = smul.addr %s260, 2
        %s262 = scalar_lea.vmem [#allocation7], %s261
        // Predicated region
        $region41: #{tpu_custom_call.1} parent=31 // pred_check
          %p263 = pneg %p119
        $region42: #{tpu_custom_call.1} parent=31 // pred_check_branch
          %265 = sbr.rel (%p263) target = $region44
        $region43: #{tpu_custom_call.1} parent=31 // pred_region
          %267 = dma.done %s259, 32
        $region44: #{tpu_custom_call.1} parent=31 // pred_fallthru
          _
        %s268 = sand.u32 %s52, 1
        %s269 = scalar_lea.sflag [#allocation3], %s268
        %s270 = sand.u32 %s52, 1
        %s271 = smul.addr %s270, 8
        %s272 = scalar_lea.vmem [#allocation2], %s271
        %p273 = pneg %p65
        %p274 = pneg %p62
        %s275 = sand.u32 %s23, 1
        %s276 = scalar_lea.sflag [#allocation6], %s275
        %s277 = sand.u32 %s80, 1
        %s278 = smul.addr %s277, 256
        %s279 = scalar_lea.vmem [#allocation5], %s278
        %p280 = pneg %p93
        %p281 = pneg %p90
        %s282 = sand.u32 %s23, 1
        %s283 = scalar_lea.sflag [#allocation6], %s282
        %s284 = sand.u32 %s106, 1
        %s285 = smul.addr %s284, 2
        %s286 = scalar_lea.vmem [#allocation7], %s285
        %p287 = pneg %p119
        %p288 = pneg %p116
        %p289 = pneg %p147
        %p290 = pneg %p144
        %s291 = sand.u32 %s134, 1
        %s292 = scalar_lea.sflag [#allocation4], %s291
        %s293 = sand.u32 %s134, 1
        %s294 = smul.addr %s293, 16
        %s295 = scalar_lea.vmem [#allocation8], %s294
        %s296 = smul.u32 16, %s30
        %s297 = smul.u32 2, %s29
        %s298 = smul.u32 2, %s29
        %s299 = smul.u32 2, %s29
        %v300 = vld [vmem:[%s242] sm:$0xff]
        %v301 = vld [vmem:[%s252] sm:$0xff]
        %v302 = vld [vmem:[%s252 + $0x8] sm:$0xff]
        %v303 = vld [vmem:[%s252 + $0x10] sm:$0xff]
        %v304 = vld [vmem:[%s252 + $0x18] sm:$0xff]
        %v305 = vld [vmem:[%s252 + $0x20] sm:$0xff]
        %v306 = vld [vmem:[%s252 + $0x28] sm:$0xff]
        %v307 = vld [vmem:[%s252 + $0x30] sm:$0xff]
        %v308 = vld [vmem:[%s252 + $0x38] sm:$0xff]
        %v309 = vld [vmem:[%s252 + $0x40] sm:$0xff]
        %v310 = vld [vmem:[%s252 + $0x48] sm:$0xff]
        %v311 = vld [vmem:[%s252 + $0x50] sm:$0xff]
        %v312 = vld [vmem:[%s252 + $0x58] sm:$0xff]
        %v313 = vld [vmem:[%s252 + $0x60] sm:$0xff]
        %v314 = vld [vmem:[%s252 + $0x68] sm:$0xff]
        %v315 = vld [vmem:[%s252 + $0x70] sm:$0xff]
        %v316 = vld [vmem:[%s252 + $0x78] sm:$0xff]
        %v317 = vld [vmem:[%s252 + $0x80] sm:$0xff]
        %v318 = vld [vmem:[%s252 + $0x88] sm:$0xff]
        %v319 = vld [vmem:[%s252 + $0x90] sm:$0xff]
        %v320 = vld [vmem:[%s252 + $0x98] sm:$0xff]
        %v321 = vld [vmem:[%s252 + $0xa0] sm:$0xff]
        %v322 = vld [vmem:[%s252 + $0xa8] sm:$0xff]
        %v323 = vld [vmem:[%s252 + $0xb0] sm:$0xff]
        %v324 = vld [vmem:[%s252 + $0xb8] sm:$0xff]
        %v325 = vld [vmem:[%s252 + $0xc0] sm:$0xff]
        %v326 = vld [vmem:[%s252 + $0xc8] sm:$0xff]
        %v327 = vld [vmem:[%s252 + $0xd0] sm:$0xff]
        %v328 = vld [vmem:[%s252 + $0xd8] sm:$0xff]
        %v329 = vld [vmem:[%s252 + $0xe0] sm:$0xff]
        %v330 = vld [vmem:[%s252 + $0xe8] sm:$0xff]
        %v331 = vld [vmem:[%s252 + $0xf0] sm:$0xff]
        %v332 = vld [vmem:[%s252 + $0xf8] sm:$0xff]
        %333 = vmatpush.msra.mxu0 %v331
        %334 = vmatpush.msra.mxu0 %v329
        %335 = vmatpush.msra.mxu0 %v327
        %336 = vmatpush.msra.mxu0 %v325
        %337 = vmatpush.msra.mxu0 %v323
        %338 = vmatpush.msra.mxu0 %v321
        %339 = vmatpush.msra.mxu0 %v319
        %340 = vmatpush.msra.mxu0 %v317
        %341 = vmatpush.msra.mxu0 %v315
        %342 = vmatpush.msra.mxu0 %v313
        %343 = vmatpush.msra.mxu0 %v311
        %344 = vmatpush.msra.mxu0 %v309
        %345 = vmatpush.msra.mxu0 %v307
        %346 = vmatpush.msra.mxu0 %v305
        %347 = vmatpush.msra.mxu0 %v303
        %348 = vmatpush.msra.mxu0 %v301
        %349 = vmatmul.f32.gmra.mxu0 %v300
        %v350 = vpop.f32.mrf.mxu0
        %v351 = vadd.f32 0.0, %v350
        %352 = vdwg.mxu0
        %353 = vmatpush.msra.mxu0 %v332
        %354 = vmatpush.msra.mxu0 %v330
        %355 = vmatpush.msra.mxu0 %v328
        %356 = vmatpush.msra.mxu0 %v326
        %357 = vmatpush.msra.mxu0 %v324
        %358 = vmatpush.msra.mxu0 %v322
        %359 = vmatpush.msra.mxu0 %v320
        %360 = vmatpush.msra.mxu0 %v318
        %361 = vmatpush.msra.mxu0 %v316
        %362 = vmatpush.msra.mxu0 %v314
        %363 = vmatpush.msra.mxu0 %v312
        %364 = vmatpush.msra.mxu0 %v310
        %365 = vmatpush.msra.mxu0 %v308
        %366 = vmatpush.msra.mxu0 %v306
        %367 = vmatpush.msra.mxu0 %v304
        %368 = vmatpush.msra.mxu0 %v302
        %369 = vmatmul.f32.gmra.mxu0 %v300
        %v370 = vpop.f32.mrf.mxu0
        %v371 = vadd.f32 0.0, %v370
        %372 = vdwg.mxu0
        %p373 = scmp.eq.s32.totalorder %s30, 0
        // Predicated region
        $region45: #{tpu_custom_call.1} parent=31 // pred_check
          %p374 = pneg %p373
        $region46: #{tpu_custom_call.1} parent=31 // pred_check_branch
          %376 = sbr.rel (%p374) target = $region48
        $region47: #{tpu_custom_call.1} parent=31 // pred_region
          %377 = vst [vmem:[%s295] sm:$0xff] %v351
          %378 = vst [vmem:[%s295 + $0x8] sm:$0xff] %v371
        $region48: #{tpu_custom_call.1} parent=31 // pred_fallthru
          _
        %p379 = scmp.gt.s32.totalorder %s30, 0
        // Predicated region
        $region49: #{tpu_custom_call.1} parent=31 // pred_check
          %p380 = pneg %p379
        $region50: #{tpu_custom_call.1} parent=31 // pred_check_branch
          %382 = sbr.rel (%p380) target = $region52
        $region51: #{tpu_custom_call.1} parent=31 // pred_region
          %v383 = vld [vmem:[%s295] sm:$0xff]
          %v384 = vld [vmem:[%s295 + $0x8] sm:$0xff]
          %v385 = vadd.f32 %v383, %v351
          %v386 = vadd.f32 %v384, %v371
          %387 = vst [vmem:[%s295] sm:$0xff] %v385
          %388 = vst [vmem:[%s295 + $0x8] sm:$0xff] %v386
        $region52: #{tpu_custom_call.1} parent=31 // pred_fallthru
          _
        %p389 = scmp.eq.s32.totalorder %s30, 1
        // Predicated region
        $region53: #{tpu_custom_call.1} parent=31 // pred_check
          %p390 = pneg %p389
        $region54: #{tpu_custom_call.1} parent=31 // pred_check_branch
          %392 = sbr.rel (%p390) target = $region56
        $region55: #{tpu_custom_call.1} parent=31 // pred_region
          %v393 = vld [vmem:[%s295] sm:$0xff]
          %v394 = vld [vmem:[%s295 + $0x8] sm:$0xff]
          %v395 = vld [vmem:[%s262] sm:$0x3]
          %v397 = vperm.slane %v395, 0
          %v398 = vperm.slane %v395, 1
          %v401 = vadd.f32 %v393, %v397
          %v402 = vadd.f32 %v394, %v398
          %403 = vst [vmem:[%s295] sm:$0xff] %v401
          %404 = vst [vmem:[%s295 + $0x8] sm:$0xff] %v402
        $region56: #{tpu_custom_call.1} parent=31 // pred_fallthru
          _
        %s405 = sand.u32 %s134, 1
        %s406 = scalar_lea.sflag [#allocation4], %s405
        %s407 = sand.u32 %s134, 1
        %s408 = smul.addr %s407, 16
        %s409 = scalar_lea.vmem [#allocation8], %s408
        // Predicated region
        $region57: #{tpu_custom_call.1} parent=31 // pred_check
          %p410 = pneg %p144
        $region58: #{tpu_custom_call.1} parent=31 // pred_check_branch
          %412 = sbr.rel (%p410) target = $region60
        $region59: #{tpu_custom_call.1} parent=31 // pred_region
          %s413 = smul.u32 2, %s29
          %415 = vsyncadd %s406, 0
          %s416 = smul.addr %s28, 4
          %s417 = sadd.s32 %s413, %s416
          %s418 = smul.addr %s417, 8
          %s419 = scalar_lea.hbm %s3, %s418
          %s421 = sshll.u32 %s409, 4
          %s422 = int_to_ptr.vmem [resolvable:$true] %s421
          %s423 = sshll.u32 %s419, 4
          %s424 = int_to_ptr.hbm [resolvable:$true] %s423
          %426 = dma.vmem_to_hbm [thread:$0]  %s422, 256, %s424, %s406
        $region60: #{tpu_custom_call.1} parent=31 // pred_fallthru
          _
      $region32: #{tpu_custom_call.1} parent=5 // pred_fallthru
        _
      %p427 = scmp.le.s32.totalorder 2, %s18
      // Predicated region
      $region61: #{tpu_custom_call.1} parent=5 // pred_check
        %p428 = pneg %p427
      $region62: #{tpu_custom_call.1} parent=5 // pred_check_branch
        %430 = sbr.rel (%p428) target = $region64
      $region63: #{tpu_custom_call.1} parent=5 // pred_region
        %s431 = ssub.s32 %s18, 2
        // Predicated region
        $region65: #{tpu_custom_call.1} parent=63 // pred_check
          %p432 = pneg %p150
        $region66: #{tpu_custom_call.1} parent=63 // pred_check_branch
          %434 = sbr.rel (%p432) target = $region68
        $region67: #{tpu_custom_call.1} parent=63 // pred_region
          %s435 = sand.u32 %s135, 1
          %s436 = scalar_lea.sflag [#allocation4], %s435
          %s437 = sand.u32 %s135, 1
          %s438 = smul.addr %s437, 16
          %s439 = scalar_lea.vmem [#allocation8], %s438
          %441 = dma.done %s436, 256
        $region68: #{tpu_custom_call.1} parent=63 // pred_fallthru
          _
      $region64: #{tpu_custom_call.1} parent=5 // pred_fallthru
        _
    $region6: #{tpu_custom_call.1} parent=1 // loop_footer
      %s22 = sadd.s32 1, %s18
    $region7: #{tpu_custom_call.1} parent=1 // loop_footer_branch
      %17 = sbr.rel target = $region3
    $region8: #{tpu_custom_call.1} parent=1 // loop_exit
      _
    %442 = vsyncpa [#allocation3], 1
    %s443 = scalar_lea.sflag [#allocation3], 1
    %444 = vsyncpa %s443, 1
    %445 = vsyncpa [#allocation6], 1
    %s446 = scalar_lea.sflag [#allocation6], 1
    %447 = vsyncpa %s446, 1
    %448 = vsyncpa [#allocation4], 1
    %s449 = scalar_lea.sflag [#allocation4], 1
    %450 = vsyncpa %s449, 1

</llo_original>
